<compile_context>
chip_gen: v7x
topology: tpu7x:2x2x1
jax: 0.10.0
libtpu: 0.0.40
codegen_flags: <defaults>
</compile_context>

<pallas_src>
import jax
import jax.numpy as jnp
from jax.experimental import pallas as pl
from jax.experimental.pallas import tpu as pltpu


def _w2v_mean_kernel(ids_ref, lens_ref, emb_row_ref, out_ref):
    """Grid point (b, l): accumulate word vector of token l of caption b into
    the resident output tile; finalize with the mean over valid tokens."""
    b = pl.program_id(0)
    l = pl.program_id(1)

    @pl.when(l == 0)
    def _init():
        out_ref[...] = jnp.zeros_like(out_ref)

    # Only accumulate real (non-pad) tokens of this caption.
    @pl.when(l < lens_ref[b])
    def _accumulate():
        out_ref[...] += emb_row_ref[...].astype(jnp.float32)

    @pl.when(l == pl.num_programs(1) - 1)
    def _finalize():
        denom = jnp.maximum(lens_ref[b], 1).astype(jnp.float32)
        out_ref[...] = out_ref[...] / denom


def w2v_txt_encoder(caption_token_ids: jax.Array,
                    caption_lengths: jax.Array,
                    w2v_table: jax.Array) -> dict:
    """Pallas equivalent of W2VTxtEncoder.forward.

    caption_token_ids: (B, L) int32 padded token ids per caption.
    caption_lengths:   (B,)   int32 number of valid tokens per caption.
    w2v_table:         (V, D) word2vec table (t2v_w2v; D == ndims).

    Returns {'text_features': (B, D) float32} — per-caption mean of the
    gathered word vectors (torch.Tensor(t) in the reference is float32;
    to_device_and_float16 as written only moves to device).
    """
    B, L = caption_token_ids.shape
    V, D = w2v_table.shape

    # Keep gather indices in range even for arbitrary pad conventions (-1 etc).
    ids_i32 = jnp.clip(caption_token_ids.astype(jnp.int32), 0, V - 1)
    lens_i32 = caption_lengths.astype(jnp.int32)

    # 3-D views so every BlockSpec's trailing two dims equal the full array
    # dims -> clean (sublane, lane) tiling, no wrapper-side padding or slicing.
    emb3 = w2v_table.reshape(V, 1, D)

    out = pl.pallas_call(
        _w2v_mean_kernel,
        out_shape=jax.ShapeDtypeStruct((B, 1, D), jnp.float32),
        grid_spec=pltpu.PrefetchScalarGridSpec(
            num_scalar_prefetch=2,          # ids, lengths -> SMEM
            grid=(B, L),                    # captions x tokens (L = reduction)
            in_specs=[
                # Data-dependent row gather: the prefetched token id picks
                # which embedding row gets DMA'd for grid point (b, l).
                pl.BlockSpec((1, 1, D), lambda b, l, tid, ln: (tid[b, l], 0, 0)),
            ],
            # Same output block across the L axis -> resident accumulator.
            out_specs=pl.BlockSpec((1, 1, D), lambda b, l, tid, ln: (b, 0, 0)),
        ),
        compiler_params=pltpu.CompilerParams(
            # B is independent (sharded across TCs on v7x); L is the token
            # reduction and must stay sequential.
            dimension_semantics=("parallel", "arbitrary"),
        ),
    )(ids_i32, lens_i32, emb3)

    return {"text_features": out.reshape(B, D)}


if __name__ == "__main__":
    key = jax.random.PRNGKey(0)
    k_ids, k_emb = jax.random.split(key)

    B, L = 2, 8           # 2 captions, up to 8 tokens each
    V, D = 256, 512       # small vocab; D lane-dense (multiple of 128)

    token_ids = jax.random.randint(k_ids, (B, L), 0, V, dtype=jnp.int32)
    lengths = jnp.array([5, 8], dtype=jnp.int32)   # caption 0 has 3 pad slots
    w2v_table = jax.random.normal(k_emb, (V, D), dtype=jnp.float32)

    result = w2v_txt_encoder(token_ids, lengths, w2v_table)
    feats = jax.block_until_ready(result["text_features"])

    # Pure-JAX reference: masked mean of the gathered word vectors.
    valid = (jnp.arange(L)[None, :] < lengths[:, None]).astype(jnp.float32)
    gathered = w2v_table[token_ids]                              # (B, L, D)
    ref = (gathered * valid[..., None]).sum(axis=1) / jnp.maximum(
        lengths, 1).astype(jnp.float32)[:, None]

    assert feats.shape == (B, D) and feats.dtype == jnp.float32
    assert jnp.allclose(feats, ref, atol=1e-5, rtol=1e-5)
    print("KERNEL_OK")
</pallas_src>

<mosaic_0001>
module attributes {stable_mosaic.version = 11 : i64} {
  func.func @_w2v_mean_kernel(%arg0: i32, %arg1: i32, %arg2: memref<2x8xi32, #tpu.memory_space<smem>>, %arg3: memref<2xi32, #tpu.memory_space<smem>>, %arg4: memref<1x1x512xf32, #tpu.memory_space<vmem>>, %arg5: memref<1x1x512xf32, #tpu.memory_space<vmem>>) attributes {dimension_semantics = [#tpu.dimension_semantics<parallel>, #tpu.dimension_semantics<arbitrary>], iteration_bounds = array<i64: 2, 8>, scalar_prefetch = 2 : i64, scratch_operands = 0 : i64, tpu.core_type = #tpu.core_type<tc>, window_params = [{transform_indices = @transform_0, window_bounds = array<i64: 1, 1, 512>}, {transform_indices = @transform_1, window_bounds = array<i64: 1, 1, 512>}]} {
    %c0_i32 = arith.constant 0 : i32
    %0 = arith.cmpi eq, %arg1, %c0_i32 : i32
    %1 = arith.extui %0 : i1 to i32
    %c0_i32_0 = arith.constant 0 : i32
    %2 = arith.cmpi ne, %1, %c0_i32_0 : i32
    scf.if %2 {
      %cst = arith.constant 0.000000e+00 : f32
      %11 = vector.broadcast %cst : f32 to vector<1x1x512xf32>
      %c0 = arith.constant 0 : index
      %c0_3 = arith.constant 0 : index
      %c0_4 = arith.constant 0 : index
      %12 = vector.load %arg5[%c0, %c0_3, %c0_4] : memref<1x1x512xf32, #tpu.memory_space<vmem>>, vector<1x1x512xf32>
      tpu.vector_store %arg5[%c0, %c0_3, %c0_4], %11 {strides = array<i32>} : memref<1x1x512xf32, #tpu.memory_space<vmem>>, vector<1x1x512xf32>,
    } else {
    }
    %3 = arith.index_cast %arg0 : i32 to index
    %4 = memref.load %arg3[%3] : memref<2xi32, #tpu.memory_space<smem>>
    %5 = arith.cmpi slt, %arg1, %4 : i32
    %6 = arith.extui %5 : i1 to i32
    %c0_i32_1 = arith.constant 0 : i32
    %7 = arith.cmpi ne, %6, %c0_i32_1 : i32
    scf.if %7 {
      %c0 = arith.constant 0 : index
      %c0_3 = arith.constant 0 : index
      %c0_4 = arith.constant 0 : index
      %11 = vector.load %arg5[%c0, %c0_3, %c0_4] : memref<1x1x512xf32, #tpu.memory_space<vmem>>, vector<1x1x512xf32>
      %c0_5 = arith.constant 0 : index
      %c0_6 = arith.constant 0 : index
      %c0_7 = arith.constant 0 : index
      %12 = vector.load %arg4[%c0_5, %c0_6, %c0_7] : memref<1x1x512xf32, #tpu.memory_space<vmem>>, vector<1x1x512xf32>
      %13 = arith.addf %11, %12 : vector<1x1x512xf32>
      %c0_8 = arith.constant 0 : index
      %c0_9 = arith.constant 0 : index
      %c0_10 = arith.constant 0 : index
      %14 = vector.load %arg5[%c0_8, %c0_9, %c0_10] : memref<1x1x512xf32, #tpu.memory_space<vmem>>, vector<1x1x512xf32>
      tpu.vector_store %arg5[%c0_8, %c0_9, %c0_10], %13 {strides = array<i32>} : memref<1x1x512xf32, #tpu.memory_space<vmem>>, vector<1x1x512xf32>,
    } else {
    }
    %c7_i32 = arith.constant 7 : i32
    %8 = arith.cmpi eq, %arg1, %c7_i32 : i32
    %9 = arith.extui %8 : i1 to i32
    %c0_i32_2 = arith.constant 0 : i32
    %10 = arith.cmpi ne, %9, %c0_i32_2 : i32
    scf.if %10 {
      %11 = arith.index_cast %arg0 : i32 to index
      %12 = memref.load %arg3[%11] : memref<2xi32, #tpu.memory_space<smem>>
      %c1_i32 = arith.constant 1 : i32
      %13 = arith.maxsi %12, %c1_i32 : i32
      %14 = arith.sitofp %13 : i32 to f32
      %c0 = arith.constant 0 : index
      %c0_3 = arith.constant 0 : index
      %c0_4 = arith.constant 0 : index
      %15 = vector.load %arg5[%c0, %c0_3, %c0_4] : memref<1x1x512xf32, #tpu.memory_space<vmem>>, vector<1x1x512xf32>
      %16 = vector.broadcast %14 : f32 to vector<1x1x512xf32>
      %17 = arith.divf %15, %16 : vector<1x1x512xf32>
      %c0_5 = arith.constant 0 : index
      %c0_6 = arith.constant 0 : index
      %c0_7 = arith.constant 0 : index
      %18 = vector.load %arg5[%c0_5, %c0_6, %c0_7] : memref<1x1x512xf32, #tpu.memory_space<vmem>>, vector<1x1x512xf32>
      tpu.vector_store %arg5[%c0_5, %c0_6, %c0_7], %17 {strides = array<i32>} : memref<1x1x512xf32, #tpu.memory_space<vmem>>, vector<1x1x512xf32>,
    } else {
    }
    return
  }
  func.func @transform_0(%arg0: i32, %arg1: i32, %arg2: memref<2x8xi32, #tpu.memory_space<smem>>, %arg3: memref<2xi32, #tpu.memory_space<smem>>) -> (i32, i32, i32) {
    %0 = arith.index_cast %arg0 : i32 to index
    %1 = arith.index_cast %arg1 : i32 to index
    %2 = memref.load %arg2[%0, %1] : memref<2x8xi32, #tpu.memory_space<smem>>
    %c0_i32 = arith.constant 0 : i32
    %c0_i32_0 = arith.constant 0 : i32
    %c0_i32_1 = arith.constant 0 : i32
    return %2, %c0_i32, %c0_i32_0 : i32, i32, i32
  }
  func.func @transform_1(%arg0: i32, %arg1: i32, %arg2: memref<2x8xi32, #tpu.memory_space<smem>>, %arg3: memref<2xi32, #tpu.memory_space<smem>>) -> (i32, i32, i32) {
    %c0_i32 = arith.constant 0 : i32
    %c0_i32_0 = arith.constant 0 : i32
    %c0_i32_1 = arith.constant 0 : i32
    return %arg0, %c0_i32, %c0_i32_0 : i32, i32, i32
  }
}

</mosaic_0001>

<llo_original>
// kernel: tpu_custom_call.1
$region0: #{tpu_custom_call.1}
  #allocation0 [shape = 'u32[]', space=smem, size = 0x4, offset = 0x4, fixed_abs, tag = 'smem constant byte address 0x4 - core index']
  #allocation1 [shape = 'u32[144,128]{1,0:T(1,128)}', space=vmem, size = 0x12000, scoped, tag = 'internal scratch']
  #allocation2 [shape = 's32[1]{0}', space=sflag, size = 0x4, scoped, tag = 'scoped memory for tpu_custom_call.1']
  #allocation3 [shape = 'u8[1024]{0}', space=smem, size = 0x400, scoped, tag = 'prefetched SMEM operand 0']
  #allocation4 [shape = 'u8[512]{0}', space=smem, size = 0x200, scoped, tag = 'prefetched SMEM operand 1']
  %s0 = inlined_call_operand.hbm [shape: s32[2,8], index: 0, kind: input, shape index: {}]
  %s1 = inlined_call_operand.vmem [shape: s32[2], index: 1, kind: input, shape index: {}]
  %s2 = inlined_call_operand.hbm [shape: f32[256,1,512], index: 2, kind: input, shape index: {}]
  %s3 = inlined_call_operand.hbm [shape: f32[2,1,512], index: 3, kind: output, shape index: {}]
  %s4 = sld [smem:[#allocation0]]
  $region53: #{tpu_custom_call.1} parent=0
    _
  %s6 = ssub.s32 1, %s4
  %s7 = scalar_select 0, %s6, %s4
  %9 = dma.hbm_to_smem %s0, 32, [#allocation3], [#allocation2]
  %s10 = sshll.u32 %s1, 4
  %s11 = int_to_ptr.vmem [resolvable:$true] %s10
  %13 = dma.vmem_to_smem %s11, 16, [#allocation4], [#allocation2]
  %14 = dma.done [#allocation2], 48
  %15 = sfence
  $region1: #{tpu_custom_call.1} parent=0
    #allocation5 [shape = 'u8[4096]{0}', space=vmem, size = 0x1000, scoped, tag = 'input window, operand 2']
    #allocation6 [shape = 's32[2]{0}', space=sflag, size = 0x8, scoped, tag = 'scoped memory for tpu_custom_call.1']
    #allocation7 [shape = 's32[2]{0}', space=sflag, size = 0x8, scoped, tag = 'scoped memory for tpu_custom_call.1']
    #allocation8 [shape = 'u8[4096]{0}', space=vmem, size = 0x1000, scoped, tag = 'output window, operand 0']
    %16 = vsyncpa [#allocation6], 0
    %s17 = scalar_lea.sflag [#allocation6], 1
    %18 = vsyncpa %s17, 0
    %19 = vsyncpa [#allocation7], 0
    %s20 = scalar_lea.sflag [#allocation7], 1
    %21 = vsyncpa %s20, 0
    loop: start=0, step=1, limit=18
    $region2: #{tpu_custom_call.1} parent=1 // loop_pre_header
      _
    $region3: #{tpu_custom_call.1} parent=1 // loop_header
      %s23 = sphi 0, %s27
      %p24 = scmp.ge.s32.totalorder %s23, 18
      %s30 = sphi 0, %s42
      %s31 = sphi 0, %s38
      %s32 = sphi 0, %s30
      %s33 = sphi 0, %s31
      %s34 = sphi 0, %s32
      %s35 = sphi 0, %s33
      %s61 = sphi 0, %s63
      %s64 = sphi 0, %s61
      %s65 = sphi 0, %s64
      %s81 = sphi 0, %s65
      %s87 = sphi 0, %s89
      %s90 = sphi 0, %s87
      %s91 = sphi 0, %s90
      %s107 = sphi 0, %s91
    $region4: #{tpu_custom_call.1} parent=1 // loop_header_branch
      %26 = sbr.rel (%p24) target = $region8
    $region5: #{tpu_custom_call.1} parent=1 // loop_body
      %s28 = ssub.s32 %s23, 1
      %s29 = ssub.s32 %s23, 2
      %s36 = sadd.s32 1, %s31
      %p37 = scmp.ge.s32.totalorder %s36, 8
      %s38 = scalar_select %p37, 0, %s36
      %s39 = sadd.s32 1, %s30
      %s40 = scalar_select %p37, %s39, %s30
      %p41 = scmp.ge.s32.totalorder %s40, 2
      %s42 = scalar_select %p41, 0, %s40
      %s43 = sshra.s32 %s31, 7
      %s44 = sand.u32 %s31, 127
      %s45 = sadd.s32 %s43, %s30
      %s46 = smul.u32 %s45, 128
      %s47 = sshra.s32 %s31, 7
      %s48 = sand.u32 %s31, 127
      %s49 = sadd.s32 %s46, %s48
      %s50 = sld [smem:[#allocation3 + %s49]]
      %s51 = sshra.s32 %s38, 7
      %s52 = sand.u32 %s38, 127
      %s53 = sadd.s32 %s51, %s42
      %s54 = smul.u32 %s53, 128
      %s55 = sshra.s32 %s38, 7
      %s56 = sand.u32 %s38, 127
      %s57 = sadd.s32 %s54, %s56
      %s58 = sld [smem:[#allocation3 + %s57]]
      %s59 = ssub.s32 %s50, %s58
      %p60 = scmp.eq.s32.totalorder %s59, 0
      %s62 = sadd.s32 %s61, 1
      %s63 = scalar_select %p60, %s61, %s62
      %p66 = pneg %p60
      %p67 = scmp.eq.s32.totalorder %s23, 15
      %p68 = por %p66, %p67
      %p69 = scmp.ne.s32.totalorder %s61, %s64
      %p70 = scmp.eq.s32.totalorder %s23, 0
      %p71 = por %p69, %p70
      %p72 = scmp.ne.s32.totalorder %s61, %s64
      %p73 = scmp.eq.s32.totalorder %s28, 15
      %p74 = por %p72, %p73
      %p75 = scmp.ne.s32.totalorder %s64, %s65
      %p76 = scmp.eq.s32.totalorder %s28, 0
      %p77 = por %p75, %p76
      %p78 = scmp.ne.s32.totalorder %s64, %s65
      %p79 = scmp.eq.s32.totalorder %s29, 15
      %p80 = por %p78, %p79
      %p82 = scmp.ne.s32.totalorder %s65, %s81
      %p83 = scmp.eq.s32.totalorder %s29, 0
      %p84 = por %p82, %p83
      %s85 = ssub.s32 %s30, %s42
      %p86 = scmp.eq.s32.totalorder %s85, 0
      %s88 = sadd.s32 %s87, 1
      %s89 = scalar_select %p86, %s87, %s88
      %p92 = pneg %p86
      %p93 = scmp.eq.s32.totalorder %s23, 15
      %p94 = por %p92, %p93
      %p95 = scmp.ne.s32.totalorder %s87, %s90
      %p96 = scmp.eq.s32.totalorder %s23, 0
      %p97 = por %p95, %p96
      %p98 = scmp.ne.s32.totalorder %s87, %s90
      %p99 = scmp.eq.s32.totalorder %s28, 15
      %p100 = por %p98, %p99
      %p101 = scmp.ne.s32.totalorder %s90, %s91
      %p102 = scmp.eq.s32.totalorder %s28, 0
      %p103 = por %p101, %p102
      %p104 = scmp.ne.s32.totalorder %s90, %s91
      %p105 = scmp.eq.s32.totalorder %s29, 15
      %p106 = por %p104, %p105
      %p108 = scmp.ne.s32.totalorder %s91, %s107
      %p109 = scmp.eq.s32.totalorder %s29, 0
      %p110 = por %p108, %p109
      %p111 = scmp.le.s32.totalorder 1, %s23
      %p112 = scmp.lt.s32.totalorder %s23, 17
      %p113 = pnand %p111, %p112
      %p114 = pneg %p113
      // Predicated region
      $region9: #{tpu_custom_call.1} parent=5 // pred_check
        _
      $region10: #{tpu_custom_call.1} parent=5 // pred_check_branch
        %116 = sbr.rel (%p113) target = $region12
      $region11: #{tpu_custom_call.1} parent=5 // pred_region
        %s117 = ssub.s32 %s23, 1
      $region12: #{tpu_custom_call.1} parent=5 // pred_fallthru
        _
      %p118 = scmp.lt.s32.totalorder %s23, 16
      // Predicated region
      $region13: #{tpu_custom_call.1} parent=5 // pred_check
        %p119 = pneg %p118
      $region14: #{tpu_custom_call.1} parent=5 // pred_check_branch
        %121 = sbr.rel (%p119) target = $region16
      $region15: #{tpu_custom_call.1} parent=5 // pred_region
        // Predicated region
        $region17: #{tpu_custom_call.1} parent=15 // pred_check
          %p122 = pneg %p71
        $region18: #{tpu_custom_call.1} parent=15 // pred_check_branch
          %124 = sbr.rel (%p122) target = $region20
        $region19: #{tpu_custom_call.1} parent=15 // pred_region
          %s125 = sand.u32 %s61, 1
          %s126 = scalar_lea.sflag [#allocation6], %s125
          %s127 = sand.u32 %s61, 1
          %s128 = smul.addr %s127, 4
          %s129 = scalar_lea.vmem [#allocation5], %s128
          %s130 = sshra.s32 %s31, 7
          %s131 = sand.u32 %s31, 127
          %s132 = sadd.s32 %s130, %s30
          %s133 = smul.u32 %s132, 128
          %s134 = sshra.s32 %s31, 7
          %s135 = sand.u32 %s31, 127
          %s136 = sadd.s32 %s133, %s135
          %s137 = sld [smem:[#allocation3 + %s136]]
          %s139 = ssub.s32 64, 64
          %140 = vsyncadd %s126, %s139
          %s141 = smul.addr %s137, 4
          %s142 = smul.addr %s141, 16
          %s143 = scalar_lea.hbm %s2, %s142
          %s145 = sshll.u32 %s129, 4
          %s146 = int_to_ptr.vmem [resolvable:$true] %s145
          %148 = dma.hbm_to_vmem [thread:$0]  %s143, 64, %s146, %s126
        $region20: #{tpu_custom_call.1} parent=15 // pred_fallthru
          _
      $region16: #{tpu_custom_call.1} parent=5 // pred_fallthru
        _
      %p149 = scmp.le.s32.totalorder 1, %s23
      %p150 = scmp.lt.s32.totalorder %s23, 17
      %p151 = pnand %p149, %p150
      %p152 = pneg %p151
      // Predicated region
      $region21: #{tpu_custom_call.1} parent=5 // pred_check
        _
      $region22: #{tpu_custom_call.1} parent=5 // pred_check_branch
        %154 = sbr.rel (%p151) target = $region24
      $region23: #{tpu_custom_call.1} parent=5 // pred_region
        %s155 = ssub.s32 %s23, 1
        %s156 = sand.u32 %s64, 1
        %s157 = scalar_lea.sflag [#allocation6], %s156
        %s158 = sand.u32 %s64, 1
        %s159 = smul.addr %s158, 4
        %s160 = scalar_lea.vmem [#allocation5], %s159
        // Predicated region
        $region25: #{tpu_custom_call.1} parent=23 // pred_check
          %p161 = pneg %p77
        $region26: #{tpu_custom_call.1} parent=23 // pred_check_branch
          %163 = sbr.rel (%p161) target = $region28
        $region27: #{tpu_custom_call.1} parent=23 // pred_region
          %164 = dma.done %s157, 64
        $region28: #{tpu_custom_call.1} parent=23 // pred_fallthru
          _
        %s165 = sand.u32 %s64, 1
        %s166 = scalar_lea.sflag [#allocation6], %s165
        %s167 = sand.u32 %s64, 1
        %s168 = smul.addr %s167, 4
        %s169 = scalar_lea.vmem [#allocation5], %s168
        %p170 = pneg %p77
        %p171 = pneg %p74
        %p172 = pneg %p103
        %p173 = pneg %p100
        %s174 = sand.u32 %s90, 1
        %s175 = scalar_lea.sflag [#allocation7], %s174
        %s176 = sand.u32 %s90, 1
        %s177 = smul.addr %s176, 4
        %s178 = scalar_lea.vmem [#allocation8], %s177
        %s179 = sshra.s32 %s33, 7
        %s180 = sand.u32 %s33, 127
        %s181 = sadd.s32 %s179, %s32
        %s182 = smul.u32 %s181, 128
        %s183 = sshra.s32 %s33, 7
        %s184 = sand.u32 %s33, 127
        %s185 = sadd.s32 %s182, %s184
        %s186 = sld [smem:[#allocation3 + %s185]]
        %p187 = scmp.eq.s32.totalorder %s33, 0
        // Predicated region
        $region29: #{tpu_custom_call.1} parent=23 // pred_check
          %p188 = pneg %p187
        $region30: #{tpu_custom_call.1} parent=23 // pred_check_branch
          %190 = sbr.rel (%p188) target = $region32
        $region31: #{tpu_custom_call.1} parent=23 // pred_region
          %v191 = vlaneseq
          %vm192 = vcmp.ge.s32.totalorder %v191, 0
          %vm193 = vcmp.lt.s32.totalorder %v191, 512
          %vm194 = vmand %vm192, %vm193
          %195 = vst.msk [vmem:[%s178] sm:$0xf] %vm194, 0.0
        $region32: #{tpu_custom_call.1} parent=23 // pred_fallthru
          _
        %s196 = sld [smem:[#allocation4 + %s32]]
        %p197 = scmp.lt.s32.totalorder %s33, %s196
        // Predicated region
        $region33: #{tpu_custom_call.1} parent=23 // pred_check
          %p198 = pneg %p197
        $region34: #{tpu_custom_call.1} parent=23 // pred_check_branch
          %200 = sbr.rel (%p198) target = $region36
        $region35: #{tpu_custom_call.1} parent=23 // pred_region
          %v201 = vld [vmem:[%s178] sm:$0xf]
          %v202 = vld [vmem:[%s160] sm:$0xf]
          %v203 = vadd.f32 %v201, %v202
          %v204 = vlaneseq
          %vm205 = vcmp.ge.s32.totalorder %v204, 0
          %vm206 = vcmp.lt.s32.totalorder %v204, 512
          %vm207 = vmand %vm205, %vm206
          %208 = vst.msk [vmem:[%s178] sm:$0xf] %vm207, %v203
        $region36: #{tpu_custom_call.1} parent=23 // pred_fallthru
          _
        %p209 = scmp.eq.s32.totalorder %s33, 7
        // Predicated region
        $region37: #{tpu_custom_call.1} parent=23 // pred_check
          %p210 = pneg %p209
        $region38: #{tpu_custom_call.1} parent=23 // pred_check_branch
          %212 = sbr.rel (%p210) target = $region40
        $region39: #{tpu_custom_call.1} parent=23 // pred_region
          %s213 = sld [smem:[#allocation4 + %s32]]
          %p214 = scmp.gt.s32.totalorder %s213, 1
          %s215 = scalar_select %p214, %s213, 1
          %s216 = scvt.s32.f32 %s215
          %v217 = vld [vmem:[%s178] sm:$0xf]
          %v218 = vstv %s216
          %v219 = vrcp.pop %v218
          %v220 = vmul.f32 %v217, %v219
          %v221 = vlaneseq
          %vm222 = vcmp.ge.s32.totalorder %v221, 0
          %vm223 = vcmp.lt.s32.totalorder %v221, 512
          %vm224 = vmand %vm222, %vm223
          %225 = vst.msk [vmem:[%s178] sm:$0xf] %vm224, %v220
        $region40: #{tpu_custom_call.1} parent=23 // pred_fallthru
          _
        %s226 = sand.u32 %s90, 1
        %s227 = scalar_lea.sflag [#allocation7], %s226
        %s228 = sand.u32 %s90, 1
        %s229 = smul.addr %s228, 4
        %s230 = scalar_lea.vmem [#allocation8], %s229
        // Predicated region
        $region41: #{tpu_custom_call.1} parent=23 // pred_check
          %p231 = pneg %p100
        $region42: #{tpu_custom_call.1} parent=23 // pred_check_branch
          %233 = sbr.rel (%p231) target = $region44
        $region43: #{tpu_custom_call.1} parent=23 // pred_region
          %s235 = ssub.s32 64, 64
          %236 = vsyncadd %s227, %s235
          %s237 = smul.addr %s32, 4
          %s238 = smul.addr %s237, 16
          %s239 = scalar_lea.hbm %s3, %s238
          %s241 = sshll.u32 %s230, 4
          %s242 = int_to_ptr.vmem [resolvable:$true] %s241
          %244 = dma.vmem_to_hbm [thread:$0]  %s242, 64, %s239, %s227
        $region44: #{tpu_custom_call.1} parent=23 // pred_fallthru
          _
      $region24: #{tpu_custom_call.1} parent=5 // pred_fallthru
        _
      %p245 = scmp.le.s32.totalorder 2, %s23
      // Predicated region
      $region45: #{tpu_custom_call.1} parent=5 // pred_check
        %p246 = pneg %p245
      $region46: #{tpu_custom_call.1} parent=5 // pred_check_branch
        %248 = sbr.rel (%p246) target = $region48
      $region47: #{tpu_custom_call.1} parent=5 // pred_region
        %s249 = ssub.s32 %s23, 2
        // Predicated region
        $region49: #{tpu_custom_call.1} parent=47 // pred_check
          %p250 = pneg %p106
        $region50: #{tpu_custom_call.1} parent=47 // pred_check_branch
          %252 = sbr.rel (%p250) target = $region52
        $region51: #{tpu_custom_call.1} parent=47 // pred_region
          %s253 = sand.u32 %s91, 1
          %s254 = scalar_lea.sflag [#allocation7], %s253
          %s255 = sand.u32 %s91, 1
          %s256 = smul.addr %s255, 4
          %s257 = scalar_lea.vmem [#allocation8], %s256
          %258 = dma.done %s254, 64
        $region52: #{tpu_custom_call.1} parent=47 // pred_fallthru
          _
      $region48: #{tpu_custom_call.1} parent=5 // pred_fallthru
        _
    $region6: #{tpu_custom_call.1} parent=1 // loop_footer
      %s27 = sadd.s32 1, %s23
    $region7: #{tpu_custom_call.1} parent=1 // loop_footer_branch
      %22 = sbr.rel target = $region3
    $region8: #{tpu_custom_call.1} parent=1 // loop_exit
      _
    %259 = vsyncpa [#allocation6], 1
    %s260 = scalar_lea.sflag [#allocation6], 1
    %261 = vsyncpa %s260, 1
    %262 = vsyncpa [#allocation7], 1
    %s263 = scalar_lea.sflag [#allocation7], 1
    %264 = vsyncpa %s263, 1

</llo_original>
